<compile_context>
chip_gen: v6e
topology: v6e:2x2x1
jax: 0.10.0
libtpu: 0.0.40
codegen_flags: <defaults>
</compile_context>

<pallas_src>
import jax
import jax.numpy as jnp
from jax.experimental import pallas as pl
from jax.experimental.pallas import tpu as pltpu


# --------------------------------------------------------------------------- #
# Kernel: one fused matmul per (batch, output-row-block) tile
# --------------------------------------------------------------------------- #
def _conv_bn_kernel(a_ref, w_ref, shift_ref, o_ref):
    """a_ref:     (1, trh*Wo, 9*Cin)  bf16 im2col activations
       w_ref:     (9*Cin, Cp)         bf16 BN-scale-folded weights
       shift_ref: (1, Cp)             f32 folded BN shift
       o_ref:     (1, trh*Wo, Cp)     f32 output
    """
    acc = jnp.dot(a_ref[0, :, :], w_ref[...],
                  preferred_element_type=jnp.float32)        # single MXU matmul, K = 9*Cin
    o_ref[0, :, :] = (acc + shift_ref[...]).astype(o_ref.dtype)


# --------------------------------------------------------------------------- #
# VMEM budgeting helpers
# --------------------------------------------------------------------------- #
def _round_up(x, m):
    return ((x + m - 1) // m) * m


def _vmem_budget():
    """Return (row_block_budget_bytes, vmem_limit_bytes), generation-aware."""
    cap = None
    try:
        cap = pltpu.get_tpu_info().vmem_capacity_bytes
    except Exception:
        cap = None
    if cap is not None and cap >= 100 * 1024 * 1024:
        # v5e / v6e: 128 MiB physical VMEM -> use it.
        return 48 * 1024 * 1024, 96 * 1024 * 1024
    # v7x (64 MiB physical) or unknown: stay conservative.
    return 20 * 1024 * 1024, 48 * 1024 * 1024


def _pick_row_block(N, Ho, Wo, Cin, Cp, budget_bytes):
    """Largest Ho-divisor row block whose (8,128)-tile-padded VMEM footprint fits
    the budget, while keeping at least ~8 total grid steps when Ho permits."""
    K = 9 * Cin

    def footprint(trh):
        m = trh * Wo
        return (
            2 * _round_up(m, 16) * _round_up(K, 128) * 2      # bf16 activations, double-buffered
            + 2 * _round_up(m, 8) * _round_up(Cp, 128) * 4    # f32 output, double-buffered
            + 2 * _round_up(K, 16) * _round_up(Cp, 128) * 2   # bf16 weights (default 2 buffers)
            + 2 * _round_up(1, 8) * _round_up(Cp, 128) * 4    # f32 shift (2 buffers)
            + _round_up(m, 8) * _round_up(Cp, 128) * 4        # in-kernel f32 temporaries
        )

    # trh*Wo must be sublane-aligned (16 covers bf16 packing and f32) unless it
    # spans the full Ho*Wo extent.
    admissible = [t for t in range(1, Ho + 1)
                  if Ho % t == 0 and (t == Ho or (t * Wo) % 16 == 0)]
    if not admissible:
        admissible = [Ho]

    fitting = [t for t in admissible if footprint(t) <= budget_bytes]
    if not fitting:
        return min(admissible)                     # best effort: smallest footprint

    target_rb = max(2, -(-8 // max(N, 1)))         # aim for >= 8 total grid steps
    good = [t for t in fitting if Ho // t >= target_rb]
    if good:
        return max(good)                           # biggest block that still pipelines/shards
    return min(fitting)                            # can't hit target: maximize parallelism


# --------------------------------------------------------------------------- #
# Forward pass
# --------------------------------------------------------------------------- #
def downsample_forward(x, w, b, gamma, beta, run_mean, run_var, eps=1e-5):
    """x: (N, Cin, H, W) f32; w: (Cout, Cin, 3, 3); b/gamma/beta/mean/var: (Cout,)."""
    N, Cin, H, W = x.shape
    Cout = w.shape[0]
    Ho = (H - 1) // 2 + 1
    Wo = (W - 1) // 2 + 1
    Cp = max(128, ((Cout + 127) // 128) * 128)     # lane-dense output stores
    K = 9 * Cin

    # ---- plain-JAX glue: layout, padding, im2col, BN folding (fused under jit) ----
    xh = jnp.transpose(x, (0, 2, 3, 1))                         # NCHW -> NHWC
    xp = jnp.pad(xh, ((0, 0), (1, 1), (1, 1), (0, 0)))          # spatial pad = 1

    # kh/kw-im2col: 9 exact (N, Ho, Wo, Cin) stride-2 views concatenated on channels.
    views = []
    for kh in range(3):
        for kw in range(3):
            views.append(xp[:, kh:kh + 2 * Ho - 1:2, kw:kw + 2 * Wo - 1:2, :])
    col = jnp.concatenate(views, axis=-1)                       # (N, Ho, Wo, 9*Cin)
    col = col.reshape(N, Ho * Wo, K).astype(jnp.bfloat16)

    # Fold inference BatchNorm into the conv: y = conv(x)*inv_std + shift.
    inv_std = gamma / jnp.sqrt(run_var + eps)
    w_taps = jnp.transpose(w, (2, 3, 1, 0)).reshape(K, Cout)    # row = kh*3*Cin + kw*Cin + ci
    w_taps = w_taps * inv_std[None, :]
    w_taps = jnp.pad(w_taps, ((0, 0), (0, Cp - Cout))).astype(jnp.bfloat16)
    shift = ((b - run_mean) * inv_std + beta).astype(jnp.float32)
    shift = jnp.pad(shift, (0, Cp - Cout)).reshape(1, Cp)

    # ---- Pallas hot path -------------------------------------------------------
    budget, vmem_limit = _vmem_budget()
    trh = _pick_row_block(N, Ho, Wo, Cin, Cp, budget)
    n_rb = Ho // trh
    m = trh * Wo

    out_flat = pl.pallas_call(
        _conv_bn_kernel,
        out_shape=jax.ShapeDtypeStruct((N, Ho * Wo, Cp), jnp.float32),
        grid=(N, n_rb),
        in_specs=[
            pl.BlockSpec((1, m, K), lambda n, r: (n, r, 0)),     # im2col activations
            pl.BlockSpec((K, Cp), lambda n, r: (0, 0)),          # weights (grid-constant)
            pl.BlockSpec((1, Cp), lambda n, r: (0, 0)),          # shift   (grid-constant)
        ],
        out_specs=pl.BlockSpec((1, m, Cp), lambda n, r: (n, r, 0)),
        compiler_params=pltpu.CompilerParams(
            dimension_semantics=("parallel", "parallel"),
            vmem_limit_bytes=vmem_limit),
    )(col, w_taps, shift)

    out = out_flat[:, :, :Cout].reshape(N, Ho, Wo, Cout)
    return jnp.transpose(out, (0, 3, 1, 2))                      # back to NCHW


def _reference(x, w, b, gamma, beta, run_mean, run_var, eps=1e-5):
    """Pure-JAX reference (lax conv + inference BN) for correctness check."""
    y = jax.lax.conv_general_dilated(
        x, w, window_strides=(2, 2), padding=((1, 1), (1, 1)),
        dimension_numbers=("NCHW", "OIHW", "NCHW"))
    y = y + b.reshape(1, -1, 1, 1)
    inv = gamma / jnp.sqrt(run_var + eps)
    return (y - run_mean.reshape(1, -1, 1, 1)) * inv.reshape(1, -1, 1, 1) \
        + beta.reshape(1, -1, 1, 1)


if __name__ == "__main__":
    key = jax.random.PRNGKey(0)
    k_x, k_w, k_b, k_g, k_be, k_m, k_v = jax.random.split(key, 7)

    N, Cin, H, W = 2, 4, 16, 16
    Cout = 32

    x = jax.random.normal(k_x, (N, Cin, H, W), dtype=jnp.float32)
    w = jax.random.normal(k_w, (Cout, Cin, 3, 3), dtype=jnp.float32) * 0.1
    b = jax.random.normal(k_b, (Cout,), dtype=jnp.float32) * 0.1
    gamma = 1.0 + 0.1 * jax.random.normal(k_g, (Cout,), dtype=jnp.float32)
    beta = 0.1 * jax.random.normal(k_be, (Cout,), dtype=jnp.float32)
    run_mean = 0.1 * jax.random.normal(k_m, (Cout,), dtype=jnp.float32)
    run_var = jnp.abs(jax.random.normal(k_v, (Cout,), dtype=jnp.float32)) + 0.5

    fwd = jax.jit(downsample_forward)
    out = jax.block_until_ready(
        fwd(x, w, b, gamma, beta, run_mean, run_var))

    ref = _reference(x, w, b, gamma, beta, run_mean, run_var)
    assert out.shape == (N, Cout, (H + 1) // 2, (W + 1) // 2), out.shape
    err = float(jnp.max(jnp.abs(out - ref)))
    # bf16 inputs / f32 accumulation: looser tolerance than a pure-f32 kernel.
    assert jnp.allclose(out, ref, atol=5e-2, rtol=5e-2), err

    print("KERNEL_OK")
</pallas_src>

<mosaic_0001>
module attributes {stable_mosaic.version = 11 : i64} {
  func.func @_conv_bn_kernel(%arg0: i32, %arg1: i32, %arg2: memref<1x16x36xbf16, #tpu.memory_space<vmem>>, %arg3: memref<36x128xbf16, #tpu.memory_space<vmem>>, %arg4: memref<1x128xf32, #tpu.memory_space<vmem>>, %arg5: memref<1x16x128xf32, #tpu.memory_space<vmem>>) attributes {dimension_semantics = [#tpu.dimension_semantics<parallel>, #tpu.dimension_semantics<parallel>], iteration_bounds = array<i64: 2, 4>, scalar_prefetch = 0 : i64, scratch_operands = 0 : i64, tpu.core_type = #tpu.core_type<tc>, window_params = [{transform_indices = @transform_0, window_bounds = array<i64: 1, 16, 36>}, {pipeline_mode = #tpu.pipeline_mode<synchronous>, transform_indices = @transform_1, window_bounds = array<i64: 36, 128>}, {pipeline_mode = #tpu.pipeline_mode<synchronous>, transform_indices = @transform_2, window_bounds = array<i64: 1, 128>}, {transform_indices = @transform_3, window_bounds = array<i64: 1, 16, 128>}]} {
    %c0 = arith.constant 0 : index
    %c0_0 = arith.constant 0 : index
    %c0_1 = arith.constant 0 : index
    %0 = vector.load %arg2[%c0, %c0_0, %c0_1] : memref<1x16x36xbf16, #tpu.memory_space<vmem>>, vector<1x16x36xbf16>
    %1 = vector.shape_cast %0 : vector<1x16x36xbf16> to vector<16x36xbf16>
    %c0_2 = arith.constant 0 : index
    %c0_3 = arith.constant 0 : index
    %2 = vector.load %arg3[%c0_2, %c0_3] : memref<36x128xbf16, #tpu.memory_space<vmem>>, vector<36x128xbf16>
    %cst = arith.constant dense<0.000000e+00> : vector<16x128xf32>
    %3 = tpu.matmul %1, %2, %cst {dimension_numbers = #tpu.dot_dimension_numbers<[1], [0], [0], [1], [0, 0, 1, 1], [], []>} : vector<16x36xbf16>, vector<36x128xbf16>, vector<16x128xf32> -> vector<16x128xf32>
    %c0_4 = arith.constant 0 : index
    %c0_5 = arith.constant 0 : index
    %4 = vector.load %arg4[%c0_4, %c0_5] : memref<1x128xf32, #tpu.memory_space<vmem>>, vector<1x128xf32>
    %5 = vector.broadcast %4 : vector<1x128xf32> to vector<16x128xf32>
    %6 = arith.addf %3, %5 : vector<16x128xf32>
    %c0_6 = arith.constant 0 : index
    %c0_7 = arith.constant 0 : index
    %c0_8 = arith.constant 0 : index
    %7 = vector.load %arg5[%c0_6, %c0_7, %c0_8] : memref<1x16x128xf32, #tpu.memory_space<vmem>>, vector<1x16x128xf32>
    %8 = vector.shape_cast %7 : vector<1x16x128xf32> to vector<16x128xf32>
    %9 = vector.shape_cast %6 : vector<16x128xf32> to vector<1x16x128xf32>
    tpu.vector_store %arg5[%c0_6, %c0_7, %c0_8], %9 {strides = array<i32>} : memref<1x16x128xf32, #tpu.memory_space<vmem>>, vector<1x16x128xf32>,
    return
  }
  func.func @transform_0(%arg0: i32, %arg1: i32) -> (i32, i32, i32) {
    %c0_i32 = arith.constant 0 : i32
    %c0_i32_0 = arith.constant 0 : i32
    return %arg0, %arg1, %c0_i32 : i32, i32, i32
  }
  func.func @transform_1(%arg0: i32, %arg1: i32) -> (i32, i32) {
    %c0_i32 = arith.constant 0 : i32
    %c0_i32_0 = arith.constant 0 : i32
    %c0_i32_1 = arith.constant 0 : i32
    return %c0_i32, %c0_i32_0 : i32, i32
  }
  func.func @transform_2(%arg0: i32, %arg1: i32) -> (i32, i32) {
    %c0_i32 = arith.constant 0 : i32
    %c0_i32_0 = arith.constant 0 : i32
    %c0_i32_1 = arith.constant 0 : i32
    return %c0_i32, %c0_i32_0 : i32, i32
  }
  func.func @transform_3(%arg0: i32, %arg1: i32) -> (i32, i32, i32) {
    %c0_i32 = arith.constant 0 : i32
    %c0_i32_0 = arith.constant 0 : i32
    return %arg0, %arg1, %c0_i32 : i32, i32, i32
  }
}

</mosaic_0001>

<llo_original>
// kernel: downsample_forward.1
$region0: #{downsample_forward.1}
  #allocation0 [shape = 'u32[]', space=smem, size = 0x4, offset = 0x4, fixed_abs, tag = 'smem constant byte address 0x4 - core index']
  #allocation1 [shape = 'u32[144,128]{1,0:T(1,128)}', space=vmem, size = 0x12000, scoped, tag = 'internal scratch']
  %s0 = inlined_call_operand.vmem [shape: bf16[2,64,36], index: 0, kind: input, shape index: {}]
  %s1 = inlined_call_operand.vmem [shape: bf16[36,128], index: 1, kind: input, shape index: {}]
  %s2 = inlined_call_operand.vmem [shape: f32[1,128], index: 2, kind: input, shape index: {}]
  %s3 = inlined_call_operand.vmem [shape: f32[2,64,128], index: 3, kind: output, shape index: {}]
  %s4 = sld [smem:[#allocation0]]
  $region45: #{downsample_forward.1} parent=0
    _
  %s6 = ssub.s32 1, %s4
  %s7 = scalar_select 0, %s6, %s4
  loop: start=0, step=1, limit=10
  $region2: #{downsample_forward.1} parent=0 // loop_pre_header
    _
  $region3: #{downsample_forward.1} parent=0 // loop_header
    %s9 = sphi 0, %s13
    %p10 = scmp.ge.s32.totalorder %s9, 10
    %s16 = sphi 0, %s28
    %s17 = sphi 0, %s24
    %s18 = sphi 0, %s16
    %s19 = sphi 0, %s17
    %s20 = sphi 0, %s18
    %s21 = sphi 0, %s19
    %s33 = sphi 0, %s35
    %s36 = sphi 0, %s33
    %s37 = sphi 0, %s36
    %s53 = sphi 0, %s37
    %s57 = sphi 0, %s57
    %s59 = sphi 0, %s57
    %s60 = sphi 0, %s59
    %s74 = sphi 0, %s60
    %s78 = sphi 0, %s78
    %s80 = sphi 0, %s78
    %s81 = sphi 0, %s80
    %s95 = sphi 0, %s81
    %s103 = sphi 0, %s105
    %s106 = sphi 0, %s103
    %s107 = sphi 0, %s106
    %s123 = sphi 0, %s107
  $region4: #{downsample_forward.1} parent=0 // loop_header_branch
    %12 = sbr.rel (%p10) target = $region8
  $region5: #{downsample_forward.1} parent=0 // loop_body
    %s14 = ssub.s32 %s9, 1
    %s15 = ssub.s32 %s9, 2
    %s22 = sadd.s32 1, %s17
    %p23 = scmp.ge.s32.totalorder %s22, 4
    %s24 = scalar_select %p23, 0, %s22
    %s25 = sadd.s32 1, %s16
    %s26 = scalar_select %p23, %s25, %s16
    %p27 = scmp.ge.s32.totalorder %s26, 2
    %s28 = scalar_select %p27, 0, %s26
    %s29 = ssub.s32 %s16, %s28
    %s30 = ssub.s32 %s17, %s24
    %s31 = sor.u32 %s29, %s30
    %p32 = scmp.eq.s32.totalorder %s31, 0
    %s34 = sadd.s32 %s33, 1
    %s35 = scalar_select %p32, %s33, %s34
    %p38 = pneg %p32
    %p39 = scmp.eq.s32.totalorder %s9, 7
    %p40 = por %p38, %p39
    %p41 = scmp.ne.s32.totalorder %s33, %s36
    %p42 = scmp.eq.s32.totalorder %s9, 0
    %p43 = por %p41, %p42
    %p44 = scmp.ne.s32.totalorder %s33, %s36
    %p45 = scmp.eq.s32.totalorder %s14, 7
    %p46 = por %p44, %p45
    %p47 = scmp.ne.s32.totalorder %s36, %s37
    %p48 = scmp.eq.s32.totalorder %s14, 0
    %p49 = por %p47, %p48
    %p50 = scmp.ne.s32.totalorder %s36, %s37
    %p51 = scmp.eq.s32.totalorder %s15, 7
    %p52 = por %p50, %p51
    %p54 = scmp.ne.s32.totalorder %s37, %s53
    %p55 = scmp.eq.s32.totalorder %s15, 0
    %p56 = por %p54, %p55
    %s58 = sadd.s32 %s57, 1
    %p61 = scmp.eq.s32.totalorder %s9, 7
    %p62 = scmp.ne.s32.totalorder %s57, %s59
    %p63 = scmp.eq.s32.totalorder %s9, 0
    %p64 = por %p62, %p63
    %p65 = scmp.ne.s32.totalorder %s57, %s59
    %p66 = scmp.eq.s32.totalorder %s14, 7
    %p67 = por %p65, %p66
    %p68 = scmp.ne.s32.totalorder %s59, %s60
    %p69 = scmp.eq.s32.totalorder %s14, 0
    %p70 = por %p68, %p69
    %p71 = scmp.ne.s32.totalorder %s59, %s60
    %p72 = scmp.eq.s32.totalorder %s15, 7
    %p73 = por %p71, %p72
    %p75 = scmp.ne.s32.totalorder %s60, %s74
    %p76 = scmp.eq.s32.totalorder %s15, 0
    %p77 = por %p75, %p76
    %s79 = sadd.s32 %s78, 1
    %p82 = scmp.eq.s32.totalorder %s9, 7
    %p83 = scmp.ne.s32.totalorder %s78, %s80
    %p84 = scmp.eq.s32.totalorder %s9, 0
    %p85 = por %p83, %p84
    %p86 = scmp.ne.s32.totalorder %s78, %s80
    %p87 = scmp.eq.s32.totalorder %s14, 7
    %p88 = por %p86, %p87
    %p89 = scmp.ne.s32.totalorder %s80, %s81
    %p90 = scmp.eq.s32.totalorder %s14, 0
    %p91 = por %p89, %p90
    %p92 = scmp.ne.s32.totalorder %s80, %s81
    %p93 = scmp.eq.s32.totalorder %s15, 7
    %p94 = por %p92, %p93
    %p96 = scmp.ne.s32.totalorder %s81, %s95
    %p97 = scmp.eq.s32.totalorder %s15, 0
    %p98 = por %p96, %p97
    %s99 = ssub.s32 %s16, %s28
    %s100 = ssub.s32 %s17, %s24
    %s101 = sor.u32 %s99, %s100
    %p102 = scmp.eq.s32.totalorder %s101, 0
    %s104 = sadd.s32 %s103, 1
    %s105 = scalar_select %p102, %s103, %s104
    %p108 = pneg %p102
    %p109 = scmp.eq.s32.totalorder %s9, 7
    %p110 = por %p108, %p109
    %p111 = scmp.ne.s32.totalorder %s103, %s106
    %p112 = scmp.eq.s32.totalorder %s9, 0
    %p113 = por %p111, %p112
    %p114 = scmp.ne.s32.totalorder %s103, %s106
    %p115 = scmp.eq.s32.totalorder %s14, 7
    %p116 = por %p114, %p115
    %p117 = scmp.ne.s32.totalorder %s106, %s107
    %p118 = scmp.eq.s32.totalorder %s14, 0
    %p119 = por %p117, %p118
    %p120 = scmp.ne.s32.totalorder %s106, %s107
    %p121 = scmp.eq.s32.totalorder %s15, 7
    %p122 = por %p120, %p121
    %p124 = scmp.ne.s32.totalorder %s107, %s123
    %p125 = scmp.eq.s32.totalorder %s15, 0
    %p126 = por %p124, %p125
    %p127 = scmp.le.s32.totalorder 1, %s9
    %p128 = scmp.lt.s32.totalorder %s9, 9
    %p129 = pnand %p127, %p128
    %p130 = pneg %p129
    // Predicated region
    $region9: #{downsample_forward.1} parent=5 // pred_check
      _
    $region10: #{downsample_forward.1} parent=5 // pred_check_branch
      %132 = sbr.rel (%p129) target = $region12
    $region11: #{downsample_forward.1} parent=5 // pred_region
      %s133 = ssub.s32 %s9, 1
      // Predicated region
      $region13: #{downsample_forward.1} parent=11 // pred_check
        %p134 = pneg %p70
      $region14: #{downsample_forward.1} parent=11 // pred_check_branch
        %136 = sbr.rel (%p134) target = $region16
      $region15: #{downsample_forward.1} parent=11 // pred_region
        _
      $region16: #{downsample_forward.1} parent=11 // pred_fallthru
        _
      // Predicated region
      $region17: #{downsample_forward.1} parent=11 // pred_check
        %p137 = pneg %p91
      $region18: #{downsample_forward.1} parent=11 // pred_check_branch
        %139 = sbr.rel (%p137) target = $region20
      $region19: #{downsample_forward.1} parent=11 // pred_region
        _
      $region20: #{downsample_forward.1} parent=11 // pred_fallthru
        _
    $region12: #{downsample_forward.1} parent=5 // pred_fallthru
      _
    %p140 = scmp.lt.s32.totalorder %s9, 8
    // Predicated region
    $region21: #{downsample_forward.1} parent=5 // pred_check
      %p141 = pneg %p140
    $region22: #{downsample_forward.1} parent=5 // pred_check_branch
      %143 = sbr.rel (%p141) target = $region24
    $region23: #{downsample_forward.1} parent=5 // pred_region
      // Predicated region
      $region25: #{downsample_forward.1} parent=23 // pred_check
        %p144 = pneg %p43
      $region26: #{downsample_forward.1} parent=23 // pred_check_branch
        %146 = sbr.rel (%p144) target = $region28
      $region27: #{downsample_forward.1} parent=23 // pred_region
        %s147 = smul.u32 2, %s17
        %p148 = scmp.lt.s32.totalorder %s16, 1
        %s149 = scalar_select %p148, %s16, 1
        %p150 = scmp.lt.s32.totalorder %s147, 7
        %s151 = scalar_select %p150, %s147, 7
        %s152 = smul.addr %s149, 8
        %s153 = sadd.s32 %s151, %s152
        %s154 = smul.addr %s153, 4
        %s155 = scalar_lea.vmem %s0, %s154
        %s156 = smul.u32 2, %s17
      $region28: #{downsample_forward.1} parent=23 // pred_fallthru
        _
    $region24: #{downsample_forward.1} parent=5 // pred_fallthru
      _
    %p157 = scmp.le.s32.totalorder 1, %s9
    %p158 = scmp.lt.s32.totalorder %s9, 9
    %p159 = pnand %p157, %p158
    %p160 = pneg %p159
    // Predicated region
    $region29: #{downsample_forward.1} parent=5 // pred_check
      _
    $region30: #{downsample_forward.1} parent=5 // pred_check_branch
      %162 = sbr.rel (%p159) target = $region32
    $region31: #{downsample_forward.1} parent=5 // pred_region
      %s163 = ssub.s32 %s9, 1
      %s164 = smul.u32 2, %s19
      %p165 = scmp.lt.s32.totalorder %s18, 1
      %s166 = scalar_select %p165, %s18, 1
      %p167 = scmp.lt.s32.totalorder %s164, 7
      %s168 = scalar_select %p167, %s164, 7
      %s169 = smul.addr %s166, 8
      %s170 = sadd.s32 %s168, %s169
      %s171 = smul.addr %s170, 4
      %s172 = scalar_lea.vmem %s0, %s171
      %p173 = pneg %p49
      %p174 = pneg %p46
      %p175 = pneg %p70
      %p176 = pneg %p67
      %p177 = pneg %p91
      %p178 = pneg %p88
      %p179 = pneg %p119
      %p180 = pneg %p116
      %s181 = smul.u32 2, %s19
      %p182 = scmp.lt.s32.totalorder %s18, 1
      %s183 = scalar_select %p182, %s18, 1
      %p184 = scmp.lt.s32.totalorder %s181, 7
      %s185 = scalar_select %p184, %s181, 7
      %s186 = smul.addr %s183, 8
      %s187 = sadd.s32 %s185, %s186
      %s188 = smul.addr %s187, 8
      %s189 = scalar_lea.vmem %s3, %s188
      %s190 = smul.u32 2, %s19
      %p191 = scmp.lt.s32.totalorder %s18, 1
      %s192 = scalar_select %p191, %s18, 1
      %p193 = scmp.lt.s32.totalorder %s190, 7
      %s194 = scalar_select %p193, %s190, 7
      %s195 = smul.addr %s192, 8
      %s196 = sadd.s32 %s194, %s195
      %s197 = smul.addr %s196, 4
      %s198 = scalar_lea.vmem %s0, %s197
      %s199 = smul.u32 2, %s19
      %s200 = smul.u32 2, %s19
      %p201 = scmp.lt.s32.totalorder %s18, 1
      %s202 = scalar_select %p201, %s18, 1
      %p203 = scmp.lt.s32.totalorder %s200, 7
      %s204 = scalar_select %p203, %s200, 7
      %s205 = smul.addr %s202, 8
      %s206 = sadd.s32 %s204, %s205
      %s207 = smul.addr %s206, 8
      %s208 = scalar_lea.vmem %s3, %s207
      %s209 = smul.u32 2, %s19
      %v211 = vld [vmem:[%s198] sm:$0xf]
      %v212 = vld [vmem:[%s198 + $0x4] sm:$0xf]
      %v213 = vld [vmem:[%s1] sm:$0xf]
      %v214 = vld [vmem:[%s1 + $0x4] sm:$0xf]
      %v215 = vld [vmem:[%s1 + $0x8] sm:$0xf]
      %v216 = vld [vmem:[%s1 + $0xc] sm:$0xf]
      %v217 = vld [vmem:[%s1 + $0x10] sm:$0x3]
      %v218 = vld [vmem:[%s2] sm:$0x1]
      %v220 = vlaneseq
      %v221 = vshrl.u32 %v220, 7
      %v222 = vsub.s32 0, %v221
      %v223 = vrot.slane %v218, %v222
      %v227 = vunpack.c.l.b16 %v211
      %v228 = vunpack.c.l.b16 %v212
      %v229 = vpack.c.b16 %v228, %v227
      %v235 = vunpack.c.l.b16 %v213
      %v236 = vunpack.c.l.b16 %v214
      %v237 = vunpack.c.l.b16 %v215
      %v238 = vunpack.c.l.b16 %v216
      %v239 = vunpack.c.l.b16 %v217
      %v240 = vpack.c.b16 %v236, %v235
      %v241 = vpack.c.b16 %v238, %v237
      %v242 = vpack.c.b16 %v239, %v239
      %vm245 = vcmask 293888
      %v247 = vsel %vm245, %v229, 0
      %vm249 = vcmask 1041408
      %v251 = vsel %vm249, %v242, 0
      %253 = vmatprep.subr.bf16.mxu0 0
      %254 = vmatpush1.bf16.msra.mxu0 0
      %255 = vmatprep.subr.bf16.mxu0 0
      %256 = vmatpush1.bf16.msra.mxu0 0
      %257 = vmatprep.subr.bf16.mxu0 0
      %258 = vmatpush1.bf16.msra.mxu0 0
      %259 = vmatprep.subr.bf16.mxu0 0
      %260 = vmatpush1.bf16.msra.mxu0 0
      %261 = vmatprep.subr.bf16.mxu0 0
      %262 = vmatpush1.bf16.msra.mxu0 0
      %263 = vmatprep.subr.bf16.mxu0 0
      %264 = vmatpush1.bf16.msra.mxu0 %v251
      %265 = vmatprep.subr.bf16.mxu0 0
      %266 = vmatpush1.bf16.msra.mxu0 %v241
      %267 = vmatprep.subr.bf16.mxu0 0
      %268 = vmatpush1.bf16.msra.mxu0 %v240
      %269 = vmatprep.subr.bf16.mxu0 0
      %270 = vmatpush2.bf16.msra.mxu0 0
      %271 = vmatprep.subr.bf16.mxu0 0
      %272 = vmatpush2.bf16.msra.mxu0 0
      %273 = vmatprep.subr.bf16.mxu0 0
      %274 = vmatpush2.bf16.msra.mxu0 0
      %275 = vmatprep.subr.bf16.mxu0 0
      %276 = vmatpush2.bf16.msra.mxu0 0
      %277 = vmatprep.subr.bf16.mxu0 0
      %278 = vmatpush2.bf16.msra.mxu0 0
      %279 = vmatprep.subr.bf16.mxu0 0
      %280 = vmatpush2.bf16.msra.mxu0 0
      %281 = vmatprep.subr.bf16.mxu0 0
      %282 = vmatpush2.bf16.msra.mxu0 0
      %283 = vmatprep.subr.bf16.mxu0 0
      %284 = vmatpush2.bf16.msra.mxu0 0
      %285 = vmatprep.mubr.bf16.mxu0 0
      %286 = vmatmul.mubr.bf16.gmra.mxu0 %v247
      %v287 = vpop.f32.mrf.mxu0
      %v288 = vadd.f32 %v223, %v287
      %v289 = vpop.f32.mrf.mxu0
      %v290 = vpop.f32.mrf.mxu0
      %v291 = vadd.f32 %v223, %v290
      %v292 = vpop.f32.mrf.mxu0
      %293 = vdwg.mxu0
      %294 = vst [vmem:[%s208] sm:$0xff] %v288
      %295 = vst [vmem:[%s208 + $0x8] sm:$0xff] %v291
      %s296 = smul.u32 2, %s19
      %p297 = scmp.lt.s32.totalorder %s18, 1
      %s298 = scalar_select %p297, %s18, 1
      %p299 = scmp.lt.s32.totalorder %s296, 7
      %s300 = scalar_select %p299, %s296, 7
      %s301 = smul.addr %s298, 8
      %s302 = sadd.s32 %s300, %s301
      %s303 = smul.addr %s302, 8
      %s304 = scalar_lea.vmem %s3, %s303
      // Predicated region
      $region33: #{downsample_forward.1} parent=31 // pred_check
        %p305 = pneg %p116
      $region34: #{downsample_forward.1} parent=31 // pred_check_branch
        %307 = sbr.rel (%p305) target = $region36
      $region35: #{downsample_forward.1} parent=31 // pred_region
        %s308 = smul.u32 2, %s19
      $region36: #{downsample_forward.1} parent=31 // pred_fallthru
        _
    $region32: #{downsample_forward.1} parent=5 // pred_fallthru
      _
    %p309 = scmp.le.s32.totalorder 2, %s9
    // Predicated region
    $region37: #{downsample_forward.1} parent=5 // pred_check
      %p310 = pneg %p309
    $region38: #{downsample_forward.1} parent=5 // pred_check_branch
      %312 = sbr.rel (%p310) target = $region40
    $region39: #{downsample_forward.1} parent=5 // pred_region
      %s313 = ssub.s32 %s9, 2
      // Predicated region
      $region41: #{downsample_forward.1} parent=39 // pred_check
        %p314 = pneg %p122
      $region42: #{downsample_forward.1} parent=39 // pred_check_branch
        %316 = sbr.rel (%p314) target = $region44
      $region43: #{downsample_forward.1} parent=39 // pred_region
        %s317 = smul.u32 2, %s21
        %p318 = scmp.lt.s32.totalorder %s20, 1
        %s319 = scalar_select %p318, %s20, 1
        %p320 = scmp.lt.s32.totalorder %s317, 7
        %s321 = scalar_select %p320, %s317, 7
        %s322 = smul.addr %s319, 8
        %s323 = sadd.s32 %s321, %s322
        %s324 = smul.addr %s323, 8
        %s325 = scalar_lea.vmem %s3, %s324
      $region44: #{downsample_forward.1} parent=39 // pred_fallthru
        _
    $region40: #{downsample_forward.1} parent=5 // pred_fallthru
      _
  $region6: #{downsample_forward.1} parent=0 // loop_footer
    %s13 = sadd.s32 1, %s9
  $region7: #{downsample_forward.1} parent=0 // loop_footer_branch
    %8 = sbr.rel target = $region3
  $region8: #{downsample_forward.1} parent=0 // loop_exit
    _

</llo_original>
